<compile_context>
chip_gen: v7x
topology: tpu7x:2x2x1
jax: 0.10.0
libtpu: 0.0.40
codegen_flags: <defaults>
</compile_context>

<pallas_src>
import functools

import jax
import jax.numpy as jnp
from jax.experimental import pallas as pl
from jax.experimental.pallas import tpu as pltpu

LANE = 128
MAX_TILE_K = 8192


def _round_up(x, m):
    return (x + m - 1) // m * m


def _pad2(x, rows, cols, dtype=None):
    y = jnp.pad(x, ((0, rows - x.shape[0]), (0, cols - x.shape[1])))
    return y.astype(dtype) if dtype is not None else y


def _vmem_limit_bytes():
    """Generation-aware VMEM limit: ~half of physical VMEM, clamped to [32, 100] MiB."""
    try:
        cap = int(pltpu.get_tpu_info().vmem_capacity_bytes)
    except Exception:
        cap = 64 << 20          # conservative default (v7x physical VMEM per core)
    return max(32 << 20, min(100 << 20, cap // 2))


def _gcn_norm(edge_index, edge_weight, num_nodes):
    """PyG gcn_norm (add_self_loops=True, improved=False): returns (src, dst, norm)."""
    src = edge_index[0]
    dst = edge_index[1]
    loop = jnp.arange(num_nodes, dtype=edge_index.dtype)
    src = jnp.concatenate([src, loop])
    dst = jnp.concatenate([dst, loop])
    ew = jnp.concatenate([edge_weight,
                          jnp.ones((num_nodes,), dtype=edge_weight.dtype)])
    deg = jnp.zeros((num_nodes,), dtype=jnp.float32).at[dst].add(ew)
    dinv = jnp.where(deg > 0, 1.0 / jnp.sqrt(deg), 0.0)
    norm = dinv[src] * ew * dinv[dst]
    return src, dst, norm


def build_normalized_adjacency(edge_index, edge_weight, num_nodes,
                               padded_nodes=None, dtype=jnp.float32):
    """Dense A_hat built directly at its (padded) shape in a single scatter pass.

    A_hat[i, j] = norm of edge j -> i (messages aggregate at target i)."""
    if padded_nodes is None:
        padded_nodes = num_nodes
    src, dst, norm = _gcn_norm(edge_index, edge_weight, num_nodes)
    a_hat = jnp.zeros((padded_nodes, padded_nodes),
                      dtype=jnp.float32).at[dst, src].add(norm)
    return a_hat.astype(dtype)


# ---------------------------------------------------------------------------
# Kernel A:  G = (A_hat @ XW1 + b1) @ W2          (conv1 fused with H1 @ W2)
# ---------------------------------------------------------------------------
def _conv1_proj_kernel(a_ref, xw1_ref, b1_ref, w2_ref, g_ref, acc_ref,
                       *, tile_k, resident):
    k = pl.program_id(1)

    @pl.when(k == 0)
    def _():
        acc_ref[...] = jnp.zeros_like(acc_ref)

    if resident:                      # full XW1 lives in VMEM; slice the k-chunk
        off = pl.multiple_of(k * tile_k, tile_k)
        rhs = xw1_ref[pl.ds(off, tile_k), :]
    else:                             # streamed (tile_k, hp) block
        rhs = xw1_ref[...]
    acc_ref[...] += jnp.dot(a_ref[...], rhs, preferred_element_type=jnp.float32)

    @pl.when(k == pl.num_programs(1) - 1)
    def _():
        h1 = acc_ref[...] + b1_ref[...]          # bias fused on resident acc
        g_ref[...] = jnp.dot(h1.astype(w2_ref.dtype), w2_ref[...],
                             preferred_element_type=jnp.float32
                             ).astype(g_ref.dtype)


# ---------------------------------------------------------------------------
# Kernel B:  out = (A_hat @ G + b2) @ Wl + bl     (conv2 fused with lin1)
# ---------------------------------------------------------------------------
def _conv2_lin_kernel(a_ref, g_ref, b2_ref, wl_ref, bl_ref, o_ref, acc_ref,
                      *, tile_k, resident):
    k = pl.program_id(1)

    @pl.when(k == 0)
    def _():
        acc_ref[...] = jnp.zeros_like(acc_ref)

    if resident:
        off = pl.multiple_of(k * tile_k, tile_k)
        rhs = g_ref[pl.ds(off, tile_k), :]
    else:
        rhs = g_ref[...]
    acc_ref[...] += jnp.dot(a_ref[...], rhs, preferred_element_type=jnp.float32)

    @pl.when(k == pl.num_programs(1) - 1)
    def _():
        h2 = (acc_ref[...] + b2_ref[...]).astype(wl_ref.dtype)   # bf16 epilogue
        o_ref[...] = (jnp.dot(h2, wl_ref[...],
                              preferred_element_type=jnp.float32)
                      + bl_ref[...])


def _plan_tiles(n, hidden, out_dim, vmem_limit, force_streaming):
    np0 = _round_up(n, LANE)
    tile_m = 128 if np0 <= 512 else 256      # small graphs: >=2 row blocks for v7x
    np_ = _round_up(n, tile_m)
    hp = _round_up(hidden, LANE)
    outp = _round_up(out_dim, LANE)

    budget = int(vmem_limit * 0.75)
    # resident weights / biases / output block / f32 accumulator (double-buffered)
    fixed = (2 * hp * hp * 2 + 2 * hp * 4            # W2 (bf16), b1/b2 (f32)
             + 2 * hp * outp * 2 + 2 * outp * 4      # Wl (bf16), bl (f32)
             + 2 * tile_m * max(hp * 2, outp * 4)    # output block
             + tile_m * hp * 4)                      # accumulator scratch

    def footprint(tk, resident):
        a_fp = 2 * tile_m * tk * 2                              # A_hat blocks (bf16)
        rhs_fp = 2 * (np_ if resident else tk) * hp * 2         # XW1 / G (bf16)
        return fixed + a_fp + rhs_fp

    resident = (not force_streaming) and footprint(tile_m, True) <= budget

    tile_k = tile_m
    nblocks = np_ // tile_m
    for d in range(1, nblocks + 1):
        if nblocks % d:
            continue
        tk = d * tile_m
        if tk > MAX_TILE_K:
            break
        if footprint(tk, resident) <= budget:
            tile_k = tk
    return np_, hp, outp, tile_m, tile_k, resident


def gcn_linear_forward(x, edge_index, edge_weight,
                       w1, b1, w2, b2, wl, bl, *, force_streaming=False):
    n = x.shape[0]
    hidden = w1.shape[1]
    out_dim = wl.shape[1]

    vmem_limit = _vmem_limit_bytes()
    np_, hp, outp, tile_m, tile_k, resident = _plan_tiles(
        n, hidden, out_dim, vmem_limit, force_streaming)
    grid = (np_ // tile_m, np_ // tile_k)

    # --- wrapper-side prep: single-pass padded bf16 A_hat; tiny F_IN matmul in XLA ---
    a_p = build_normalized_adjacency(edge_index, edge_weight, n,
                                     padded_nodes=np_, dtype=jnp.bfloat16)
    xw1 = _pad2(x @ w1, np_, hp, jnp.bfloat16)
    b1_p = _pad2(b1, 1, hp, jnp.float32)
    w2_p = _pad2(w2, hp, hp, jnp.bfloat16)
    b2_p = _pad2(b2, 1, hp, jnp.float32)
    wl_p = _pad2(wl, hp, outp, jnp.bfloat16)     # bf16 epilogue matmul
    bl_p = _pad2(bl, 1, outp, jnp.float32)

    cparams = pltpu.CompilerParams(
        dimension_semantics=("parallel", "arbitrary"),
        vmem_limit_bytes=vmem_limit)

    a_spec = pl.BlockSpec((tile_m, tile_k), lambda i, k: (i, k))
    if resident:
        rhs_spec = pl.BlockSpec((np_, hp), lambda i, k: (0, 0))      # VMEM-resident
    else:
        rhs_spec = pl.BlockSpec((tile_k, hp), lambda i, k: (k, 0))   # streamed

    # Kernel A: G = (A_hat @ XW1 + b1) @ W2
    g = pl.pallas_call(
        functools.partial(_conv1_proj_kernel, tile_k=tile_k, resident=resident),
        out_shape=jax.ShapeDtypeStruct((np_, hp), jnp.bfloat16),
        grid=grid,
        in_specs=[
            a_spec,                                        # A_hat block
            rhs_spec,                                      # XW1
            pl.BlockSpec((1, hp), lambda i, k: (0, 0)),    # b1 (resident)
            pl.BlockSpec((hp, hp), lambda i, k: (0, 0)),   # W2 (resident)
        ],
        out_specs=pl.BlockSpec((tile_m, hp), lambda i, k: (i, 0)),
        scratch_shapes=[pltpu.VMEM((tile_m, hp), jnp.float32)],
        compiler_params=cparams,
    )(a_p, xw1, b1_p, w2_p)

    # Kernel B: out = (A_hat @ G + b2) @ Wl + bl   (lane-dense outp output)
    out_p = pl.pallas_call(
        functools.partial(_conv2_lin_kernel, tile_k=tile_k, resident=resident),
        out_shape=jax.ShapeDtypeStruct((np_, outp), jnp.float32),
        grid=grid,
        in_specs=[
            a_spec,                                         # A_hat block
            rhs_spec,                                       # G
            pl.BlockSpec((1, hp), lambda i, k: (0, 0)),     # b2
            pl.BlockSpec((hp, outp), lambda i, k: (0, 0)),  # Wl (bf16, padded)
            pl.BlockSpec((1, outp), lambda i, k: (0, 0)),   # bl (padded)
        ],
        out_specs=pl.BlockSpec((tile_m, outp), lambda i, k: (i, 0)),
        scratch_shapes=[pltpu.VMEM((tile_m, hp), jnp.float32)],
        compiler_params=cparams,
    )(a_p, g, b2_p, wl_p, bl_p)

    return out_p[:n, :out_dim]


if __name__ == "__main__":
    key = jax.random.PRNGKey(0)
    N = 16                 # number of graph nodes
    F_IN = 8               # num_node_features
    H = 32                 # hidden_dim
    OUT = 1                # output_dim
    E = 48                 # number of directed edges

    k_x, k_ei, k_ew, k_w1, k_w2, k_wl, k_bl = jax.random.split(key, 7)

    # synthetic graph data (data.x, data.edge_index, data.edge_weight)
    x = jax.random.normal(k_x, (N, F_IN), dtype=jnp.float32)
    edge_index = jax.random.randint(k_ei, (2, E), 0, N, dtype=jnp.int32)
    edge_weight = jax.random.uniform(k_ew, (E,), dtype=jnp.float32)

    # deterministic parameter init (glorot-ish scaling)
    w1 = jax.random.normal(k_w1, (F_IN, H), dtype=jnp.float32) / jnp.sqrt(F_IN)
    b1 = jnp.zeros((1, H), dtype=jnp.float32)
    w2 = jax.random.normal(k_w2, (H, H), dtype=jnp.float32) / jnp.sqrt(H)
    b2 = jnp.zeros((1, H), dtype=jnp.float32)
    wl = jax.random.normal(k_wl, (H, OUT), dtype=jnp.float32) / jnp.sqrt(H)
    bl = jax.random.normal(k_bl, (1, OUT), dtype=jnp.float32) * 0.01

    fwd = jax.jit(gcn_linear_forward, static_argnames=("force_streaming",))

    out = fwd(x, edge_index, edge_weight, w1, b1, w2, b2, wl, bl)
    jax.block_until_ready(out)
    assert out.shape == (N, OUT)

    # Also exercise the streaming fallback path (used when XW1/G exceeds VMEM).
    out_stream = fwd(x, edge_index, edge_weight, w1, b1, w2, b2, wl, bl,
                     force_streaming=True)
    jax.block_until_ready(out_stream)
    assert out_stream.shape == (N, OUT)

    # Reference 1: mirrors the kernel's dtype path (bf16 operands, f32 accum).
    a_hat = build_normalized_adjacency(edge_index, edge_weight, N)   # f32, unpadded
    a_bf = a_hat.astype(jnp.bfloat16)
    xw1_bf = (x @ w1).astype(jnp.bfloat16)
    h1_ref = jnp.dot(a_bf, xw1_bf, preferred_element_type=jnp.float32) + b1
    g_ref = jnp.dot(h1_ref.astype(jnp.bfloat16), w2.astype(jnp.bfloat16),
                    preferred_element_type=jnp.float32).astype(jnp.bfloat16)
    h2_ref = jnp.dot(a_bf, g_ref, preferred_element_type=jnp.float32) + b2
    ref_mirror = (jnp.dot(h2_ref.astype(jnp.bfloat16), wl.astype(jnp.bfloat16),
                          preferred_element_type=jnp.float32) + bl)
    assert jnp.allclose(out, ref_mirror, atol=3e-3, rtol=3e-3), (
        float(jnp.max(jnp.abs(out - ref_mirror))))
    assert jnp.allclose(out_stream, ref_mirror, atol=3e-3, rtol=3e-3), (
        float(jnp.max(jnp.abs(out_stream - ref_mirror))))

    # Reference 2: full-f32 forward (loose tolerance covers bf16 A_hat rounding).
    ref_h1 = a_hat @ (x @ w1) + b1
    ref_h2 = a_hat @ (ref_h1 @ w2) + b2
    ref_f32 = ref_h2 @ wl + bl
    assert jnp.allclose(out, ref_f32, atol=5e-2, rtol=5e-2), (
        float(jnp.max(jnp.abs(out - ref_f32))))

    print("KERNEL_OK")
</pallas_src>

<mosaic_0001>
module attributes {stable_mosaic.version = 11 : i64} {
  func.func private @main(%arg0: i32) attributes {dimension_semantics = [#tpu.dimension_semantics<core_parallel>], iteration_bounds = array<i64: 2>, tpu.core_type = #tpu.core_type<sc_scalar_subcore>, window_params = []} {
    return
  }
}

module attributes {stable_mosaic.version = 11 : i64} {
  func.func private @main(%arg0: i32) attributes {dimension_semantics = [#tpu.dimension_semantics<core_parallel>], iteration_bounds = array<i64: 2>, tpu.core_type = #tpu.core_type<sc_scalar_subcore>, window_params = []} {
    return
  }
}

module attributes {stable_mosaic.version = 11 : i64} {
  func.func @_conv2_lin_kernel(%arg0: i32, %arg1: i32, %arg2: memref<128x128xbf16, #tpu.memory_space<vmem>>, %arg3: memref<128x128xbf16, #tpu.memory_space<vmem>>, %arg4: memref<1x128xf32, #tpu.memory_space<vmem>>, %arg5: memref<128x128xbf16, #tpu.memory_space<vmem>>, %arg6: memref<1x128xf32, #tpu.memory_space<vmem>>, %arg7: memref<128x128xf32, #tpu.memory_space<vmem>>, %arg8: memref<128x128xf32, #tpu.memory_space<vmem>>) attributes {dimension_semantics = [#tpu.dimension_semantics<parallel>, #tpu.dimension_semantics<arbitrary>], iteration_bounds = array<i64: 1, 1>, scalar_prefetch = 0 : i64, scratch_operands = 1 : i64, tpu.core_type = #tpu.core_type<tc>, window_params = [{transform_indices = @transform_0, window_bounds = array<i64: 128, 128>}, {pipeline_mode = #tpu.pipeline_mode<synchronous>, transform_indices = @transform_1, window_bounds = array<i64: 128, 128>}, {pipeline_mode = #tpu.pipeline_mode<synchronous>, transform_indices = @transform_2, window_bounds = array<i64: 1, 128>}, {pipeline_mode = #tpu.pipeline_mode<synchronous>, transform_indices = @transform_3, window_bounds = array<i64: 128, 128>}, {pipeline_mode = #tpu.pipeline_mode<synchronous>, transform_indices = @transform_4, window_bounds = array<i64: 1, 128>}, {transform_indices = @transform_5, window_bounds = array<i64: 128, 128>}]} {
    %c0_i32 = arith.constant 0 : i32
    %0 = arith.cmpi eq, %arg1, %c0_i32 : i32
    %1 = arith.extui %0 : i1 to i32
    %c0_i32_0 = arith.constant 0 : i32
    %2 = arith.cmpi ne, %1, %c0_i32_0 : i32
    scf.if %2 {
      %cst_9 = arith.constant 0.000000e+00 : f32
      %15 = vector.broadcast %cst_9 : f32 to vector<128x128xf32>
      %c0_10 = arith.constant 0 : index
      %c0_11 = arith.constant 0 : index
      %16 = vector.load %arg8[%c0_10, %c0_11] : memref<128x128xf32, #tpu.memory_space<vmem>>, vector<128x128xf32>
      tpu.vector_store %arg8[%c0_10, %c0_11], %15 {strides = array<i32>} : memref<128x128xf32, #tpu.memory_space<vmem>>, vector<128x128xf32>,
    } else {
    }
    %c128_i32 = arith.constant 128 : i32
    %3 = arith.muli %arg1, %c128_i32 : i32
    %4 = tpu.assume_multiple %3, 128 : i32
    %5 = arith.index_cast %4 : i32 to index
    %c0 = arith.constant 0 : index
    %6 = vector.load %arg3[%5, %c0] : memref<128x128xbf16, #tpu.memory_space<vmem>>, vector<128x128xbf16>
    %c0_1 = arith.constant 0 : index
    %c0_2 = arith.constant 0 : index
    %7 = vector.load %arg8[%c0_1, %c0_2] : memref<128x128xf32, #tpu.memory_space<vmem>>, vector<128x128xf32>
    %c0_3 = arith.constant 0 : index
    %c0_4 = arith.constant 0 : index
    %8 = vector.load %arg2[%c0_3, %c0_4] : memref<128x128xbf16, #tpu.memory_space<vmem>>, vector<128x128xbf16>
    %cst = arith.constant dense<0.000000e+00> : vector<128x128xf32>
    %9 = tpu.matmul %8, %6, %cst {dimension_numbers = #tpu.dot_dimension_numbers<[1], [0], [0], [1], [0, 0, 1, 1], [], []>} : vector<128x128xbf16>, vector<128x128xbf16>, vector<128x128xf32> -> vector<128x128xf32>
    %10 = arith.addf %7, %9 : vector<128x128xf32>
    %c0_5 = arith.constant 0 : index
    %c0_6 = arith.constant 0 : index
    %11 = vector.load %arg8[%c0_5, %c0_6] : memref<128x128xf32, #tpu.memory_space<vmem>>, vector<128x128xf32>
    tpu.vector_store %arg8[%c0_5, %c0_6], %10 {strides = array<i32>} : memref<128x128xf32, #tpu.memory_space<vmem>>, vector<128x128xf32>,
    %c0_i32_7 = arith.constant 0 : i32
    %12 = arith.cmpi eq, %arg1, %c0_i32_7 : i32
    %13 = arith.extui %12 : i1 to i32
    %c0_i32_8 = arith.constant 0 : i32
    %14 = arith.cmpi ne, %13, %c0_i32_8 : i32
    scf.if %14 {
      %c0_9 = arith.constant 0 : index
      %c0_10 = arith.constant 0 : index
      %15 = vector.load %arg8[%c0_9, %c0_10] : memref<128x128xf32, #tpu.memory_space<vmem>>, vector<128x128xf32>
      %c0_11 = arith.constant 0 : index
      %c0_12 = arith.constant 0 : index
      %16 = vector.load %arg4[%c0_11, %c0_12] : memref<1x128xf32, #tpu.memory_space<vmem>>, vector<1x128xf32>
      %17 = vector.broadcast %16 : vector<1x128xf32> to vector<128x128xf32>
      %18 = arith.addf %15, %17 : vector<128x128xf32>
      %19 = arith.truncf %18 : vector<128x128xf32> to vector<128x128xbf16>
      %c0_13 = arith.constant 0 : index
      %c0_14 = arith.constant 0 : index
      %20 = vector.load %arg5[%c0_13, %c0_14] : memref<128x128xbf16, #tpu.memory_space<vmem>>, vector<128x128xbf16>
      %cst_15 = arith.constant dense<0.000000e+00> : vector<128x128xf32>
      %21 = tpu.matmul %19, %20, %cst_15 {dimension_numbers = #tpu.dot_dimension_numbers<[1], [0], [0], [1], [0, 0, 1, 1], [], []>} : vector<128x128xbf16>, vector<128x128xbf16>, vector<128x128xf32> -> vector<128x128xf32>
      %c0_16 = arith.constant 0 : index
      %c0_17 = arith.constant 0 : index
      %22 = vector.load %arg6[%c0_16, %c0_17] : memref<1x128xf32, #tpu.memory_space<vmem>>, vector<1x128xf32>
      %23 = vector.broadcast %22 : vector<1x128xf32> to vector<128x128xf32>
      %24 = arith.addf %21, %23 : vector<128x128xf32>
      %c0_18 = arith.constant 0 : index
      %c0_19 = arith.constant 0 : index
      %25 = vector.load %arg7[%c0_18, %c0_19] : memref<128x128xf32, #tpu.memory_space<vmem>>, vector<128x128xf32>
      tpu.vector_store %arg7[%c0_18, %c0_19], %24 {strides = array<i32>} : memref<128x128xf32, #tpu.memory_space<vmem>>, vector<128x128xf32>,
    } else {
    }
    return
  }
  func.func @transform_0(%arg0: i32, %arg1: i32) -> (i32, i32) {
    %c0_i32 = arith.constant 0 : i32
    return %arg0, %arg1 : i32, i32
  }
  func.func @transform_1(%arg0: i32, %arg1: i32) -> (i32, i32) {
    %c0_i32 = arith.constant 0 : i32
    %c0_i32_0 = arith.constant 0 : i32
    %c0_i32_1 = arith.constant 0 : i32
    return %c0_i32, %c0_i32_0 : i32, i32
  }
  func.func @transform_2(%arg0: i32, %arg1: i32) -> (i32, i32) {
    %c0_i32 = arith.constant 0 : i32
    %c0_i32_0 = arith.constant 0 : i32
    %c0_i32_1 = arith.constant 0 : i32
    return %c0_i32, %c0_i32_0 : i32, i32
  }
  func.func @transform_3(%arg0: i32, %arg1: i32) -> (i32, i32) {
    %c0_i32 = arith.constant 0 : i32
    %c0_i32_0 = arith.constant 0 : i32
    %c0_i32_1 = arith.constant 0 : i32
    return %c0_i32, %c0_i32_0 : i32, i32
  }
  func.func @transform_4(%arg0: i32, %arg1: i32) -> (i32, i32) {
    %c0_i32 = arith.constant 0 : i32
    %c0_i32_0 = arith.constant 0 : i32
    %c0_i32_1 = arith.constant 0 : i32
    return %c0_i32, %c0_i32_0 : i32, i32
  }
  func.func @transform_5(%arg0: i32, %arg1: i32) -> (i32, i32) {
    %c0_i32 = arith.constant 0 : i32
    %c0_i32_0 = arith.constant 0 : i32
    return %arg0, %c0_i32 : i32, i32
  }
}

module attributes {stable_mosaic.version = 11 : i64} {
  func.func @_conv1_proj_kernel(%arg0: i32, %arg1: i32, %arg2: memref<128x128xbf16, #tpu.memory_space<vmem>>, %arg3: memref<128x128xbf16, #tpu.memory_space<vmem>>, %arg4: memref<1x128xf32, #tpu.memory_space<vmem>>, %arg5: memref<128x128xbf16, #tpu.memory_space<vmem>>, %arg6: memref<128x128xbf16, #tpu.memory_space<vmem>>, %arg7: memref<128x128xf32, #tpu.memory_space<vmem>>) attributes {dimension_semantics = [#tpu.dimension_semantics<parallel>, #tpu.dimension_semantics<arbitrary>], iteration_bounds = array<i64: 1, 1>, scalar_prefetch = 0 : i64, scratch_operands = 1 : i64, tpu.core_type = #tpu.core_type<tc>, window_params = [{transform_indices = @transform_0, window_bounds = array<i64: 128, 128>}, {pipeline_mode = #tpu.pipeline_mode<synchronous>, transform_indices = @transform_1, window_bounds = array<i64: 128, 128>}, {pipeline_mode = #tpu.pipeline_mode<synchronous>, transform_indices = @transform_2, window_bounds = array<i64: 1, 128>}, {pipeline_mode = #tpu.pipeline_mode<synchronous>, transform_indices = @transform_3, window_bounds = array<i64: 128, 128>}, {transform_indices = @transform_4, window_bounds = array<i64: 128, 128>}]} {
    %c0_i32 = arith.constant 0 : i32
    %0 = arith.cmpi eq, %arg1, %c0_i32 : i32
    %1 = arith.extui %0 : i1 to i32
    %c0_i32_0 = arith.constant 0 : i32
    %2 = arith.cmpi ne, %1, %c0_i32_0 : i32
    scf.if %2 {
      %cst_9 = arith.constant 0.000000e+00 : f32
      %15 = vector.broadcast %cst_9 : f32 to vector<128x128xf32>
      %c0_10 = arith.constant 0 : index
      %c0_11 = arith.constant 0 : index
      %16 = vector.load %arg7[%c0_10, %c0_11] : memref<128x128xf32, #tpu.memory_space<vmem>>, vector<128x128xf32>
      tpu.vector_store %arg7[%c0_10, %c0_11], %15 {strides = array<i32>} : memref<128x128xf32, #tpu.memory_space<vmem>>, vector<128x128xf32>,
    } else {
    }
    %c128_i32 = arith.constant 128 : i32
    %3 = arith.muli %arg1, %c128_i32 : i32
    %4 = tpu.assume_multiple %3, 128 : i32
    %5 = arith.index_cast %4 : i32 to index
    %c0 = arith.constant 0 : index
    %6 = vector.load %arg3[%5, %c0] : memref<128x128xbf16, #tpu.memory_space<vmem>>, vector<128x128xbf16>
    %c0_1 = arith.constant 0 : index
    %c0_2 = arith.constant 0 : index
    %7 = vector.load %arg7[%c0_1, %c0_2] : memref<128x128xf32, #tpu.memory_space<vmem>>, vector<128x128xf32>
    %c0_3 = arith.constant 0 : index
    %c0_4 = arith.constant 0 : index
    %8 = vector.load %arg2[%c0_3, %c0_4] : memref<128x128xbf16, #tpu.memory_space<vmem>>, vector<128x128xbf16>
    %cst = arith.constant dense<0.000000e+00> : vector<128x128xf32>
    %9 = tpu.matmul %8, %6, %cst {dimension_numbers = #tpu.dot_dimension_numbers<[1], [0], [0], [1], [0, 0, 1, 1], [], []>} : vector<128x128xbf16>, vector<128x128xbf16>, vector<128x128xf32> -> vector<128x128xf32>
    %10 = arith.addf %7, %9 : vector<128x128xf32>
    %c0_5 = arith.constant 0 : index
    %c0_6 = arith.constant 0 : index
    %11 = vector.load %arg7[%c0_5, %c0_6] : memref<128x128xf32, #tpu.memory_space<vmem>>, vector<128x128xf32>
    tpu.vector_store %arg7[%c0_5, %c0_6], %10 {strides = array<i32>} : memref<128x128xf32, #tpu.memory_space<vmem>>, vector<128x128xf32>,
    %c0_i32_7 = arith.constant 0 : i32
    %12 = arith.cmpi eq, %arg1, %c0_i32_7 : i32
    %13 = arith.extui %12 : i1 to i32
    %c0_i32_8 = arith.constant 0 : i32
    %14 = arith.cmpi ne, %13, %c0_i32_8 : i32
    scf.if %14 {
      %c0_9 = arith.constant 0 : index
      %c0_10 = arith.constant 0 : index
      %15 = vector.load %arg7[%c0_9, %c0_10] : memref<128x128xf32, #tpu.memory_space<vmem>>, vector<128x128xf32>
      %c0_11 = arith.constant 0 : index
      %c0_12 = arith.constant 0 : index
      %16 = vector.load %arg4[%c0_11, %c0_12] : memref<1x128xf32, #tpu.memory_space<vmem>>, vector<1x128xf32>
      %17 = vector.broadcast %16 : vector<1x128xf32> to vector<128x128xf32>
      %18 = arith.addf %15, %17 : vector<128x128xf32>
      %19 = arith.truncf %18 : vector<128x128xf32> to vector<128x128xbf16>
      %c0_13 = arith.constant 0 : index
      %c0_14 = arith.constant 0 : index
      %20 = vector.load %arg5[%c0_13, %c0_14] : memref<128x128xbf16, #tpu.memory_space<vmem>>, vector<128x128xbf16>
      %cst_15 = arith.constant dense<0.000000e+00> : vector<128x128xf32>
      %21 = tpu.matmul %19, %20, %cst_15 {dimension_numbers = #tpu.dot_dimension_numbers<[1], [0], [0], [1], [0, 0, 1, 1], [], []>} : vector<128x128xbf16>, vector<128x128xbf16>, vector<128x128xf32> -> vector<128x128xf32>
      %22 = arith.truncf %21 : vector<128x128xf32> to vector<128x128xbf16>
      %c0_16 = arith.constant 0 : index
      %c0_17 = arith.constant 0 : index
      %23 = vector.load %arg6[%c0_16, %c0_17] : memref<128x128xbf16, #tpu.memory_space<vmem>>, vector<128x128xbf16>
      tpu.vector_store %arg6[%c0_16, %c0_17], %22 {strides = array<i32>} : memref<128x128xbf16, #tpu.memory_space<vmem>>, vector<128x128xbf16>,
    } else {
    }
    return
  }
  func.func @transform_0(%arg0: i32, %arg1: i32) -> (i32, i32) {
    %c0_i32 = arith.constant 0 : i32
    return %arg0, %arg1 : i32, i32
  }
  func.func @transform_1(%arg0: i32, %arg1: i32) -> (i32, i32) {
    %c0_i32 = arith.constant 0 : i32
    %c0_i32_0 = arith.constant 0 : i32
    %c0_i32_1 = arith.constant 0 : i32
    return %c0_i32, %c0_i32_0 : i32, i32
  }
  func.func @transform_2(%arg0: i32, %arg1: i32) -> (i32, i32) {
    %c0_i32 = arith.constant 0 : i32
    %c0_i32_0 = arith.constant 0 : i32
    %c0_i32_1 = arith.constant 0 : i32
    return %c0_i32, %c0_i32_0 : i32, i32
  }
  func.func @transform_3(%arg0: i32, %arg1: i32) -> (i32, i32) {
    %c0_i32 = arith.constant 0 : i32
    %c0_i32_0 = arith.constant 0 : i32
    %c0_i32_1 = arith.constant 0 : i32
    return %c0_i32, %c0_i32_0 : i32, i32
  }
  func.func @transform_4(%arg0: i32, %arg1: i32) -> (i32, i32) {
    %c0_i32 = arith.constant 0 : i32
    %c0_i32_0 = arith.constant 0 : i32
    return %arg0, %c0_i32 : i32, i32
  }
}

</mosaic_0001>

<llo_original>
// kernel: gcn_linear_forward.3
$region0: #{gcn_linear_forward.3}
  #allocation0 [shape = 'u32[]', space=smem, size = 0x4, offset = 0x4, fixed_abs, tag = 'smem constant byte address 0x4 - core index']
  #allocation1 [shape = 'u32[144,128]{1,0:T(1,128)}', space=vmem, size = 0x12000, scoped, tag = 'internal scratch']
  #allocation2 [shape = 'f32[128,128]{1,0:T(8,128)}', space=vmem, size = 0x10000, scoped, tag = 'scratch operand']
  %s0 = inlined_call_operand.vmem [shape: bf16[128,128], index: 0, kind: input, shape index: {}]
  %s1 = inlined_call_operand.vmem [shape: bf16[128,128], index: 1, kind: input, shape index: {}]
  %s2 = inlined_call_operand.vmem [shape: f32[1,128], index: 2, kind: input, shape index: {}]
  %s3 = inlined_call_operand.vmem [shape: bf16[128,128], index: 3, kind: input, shape index: {}]
  %s4 = inlined_call_operand.vmem [shape: f32[1,128], index: 4, kind: input, shape index: {}]
  %s5 = inlined_call_operand.vmem [shape: f32[128,128], index: 5, kind: output, shape index: {}]
  %s6 = sld [smem:[#allocation0]]
  $region38: #{gcn_linear_forward.3} parent=0
    _
  %s8 = ssub.s32 1, %s6
  %s9 = scalar_select 0, %s8, %s6
  // Predicated region
  $region2: #{gcn_linear_forward.3} parent=0 // pred_check
    _
  $region3: #{gcn_linear_forward.3} parent=0 // pred_check_branch
    %11 = sbr.rel (0) target = $region5
  $region4: #{gcn_linear_forward.3} parent=0 // pred_region
    _
  $region5: #{gcn_linear_forward.3} parent=0 // pred_fallthru
    _
  // Predicated region
  $region6: #{gcn_linear_forward.3} parent=0 // pred_check
    _
  $region7: #{gcn_linear_forward.3} parent=0 // pred_check_branch
    %13 = sbr.rel (0) target = $region9
  $region8: #{gcn_linear_forward.3} parent=0 // pred_region
    _
  $region9: #{gcn_linear_forward.3} parent=0 // pred_fallthru
    _
  // Predicated region
  $region10: #{gcn_linear_forward.3} parent=0 // pred_check
    _
  $region11: #{gcn_linear_forward.3} parent=0 // pred_check_branch
    %15 = sbr.rel (0) target = $region13
  $region12: #{gcn_linear_forward.3} parent=0 // pred_region
    _
  $region13: #{gcn_linear_forward.3} parent=0 // pred_fallthru
    _
  // Predicated region
  $region14: #{gcn_linear_forward.3} parent=0 // pred_check
    _
  $region15: #{gcn_linear_forward.3} parent=0 // pred_check_branch
    %17 = sbr.rel (0) target = $region17
  $region16: #{gcn_linear_forward.3} parent=0 // pred_region
    _
  $region17: #{gcn_linear_forward.3} parent=0 // pred_fallthru
    _
  // Predicated region
  $region18: #{gcn_linear_forward.3} parent=0 // pred_check
    _
  $region19: #{gcn_linear_forward.3} parent=0 // pred_check_branch
    %19 = sbr.rel (0) target = $region21
  $region20: #{gcn_linear_forward.3} parent=0 // pred_region
    _
  $region21: #{gcn_linear_forward.3} parent=0 // pred_fallthru
    _
  %p21 = scmp.eq.s32.totalorder 0, 0
  // Predicated region
  $region22: #{gcn_linear_forward.3} parent=0 // pred_check
    %p22 = pneg %p21
  $region23: #{gcn_linear_forward.3} parent=0 // pred_check_branch
    %24 = sbr.rel (%p22) target = $region25
  $region24: #{gcn_linear_forward.3} parent=0 // pred_region
    %25 = vst [vmem:[#allocation2] sm:$0xff] 0.0
    %26 = vst [vmem:[#allocation2 + $0x8] sm:$0xff] 0.0
    %27 = vst [vmem:[#allocation2 + $0x10] sm:$0xff] 0.0
    %28 = vst [vmem:[#allocation2 + $0x18] sm:$0xff] 0.0
    %29 = vst [vmem:[#allocation2 + $0x20] sm:$0xff] 0.0
    %30 = vst [vmem:[#allocation2 + $0x28] sm:$0xff] 0.0
    %31 = vst [vmem:[#allocation2 + $0x30] sm:$0xff] 0.0
    %32 = vst [vmem:[#allocation2 + $0x38] sm:$0xff] 0.0
    %33 = vst [vmem:[#allocation2 + $0x40] sm:$0xff] 0.0
    %34 = vst [vmem:[#allocation2 + $0x48] sm:$0xff] 0.0
    %35 = vst [vmem:[#allocation2 + $0x50] sm:$0xff] 0.0
    %36 = vst [vmem:[#allocation2 + $0x58] sm:$0xff] 0.0
    %37 = vst [vmem:[#allocation2 + $0x60] sm:$0xff] 0.0
    %38 = vst [vmem:[#allocation2 + $0x68] sm:$0xff] 0.0
    %39 = vst [vmem:[#allocation2 + $0x70] sm:$0xff] 0.0
    %40 = vst [vmem:[#allocation2 + $0x78] sm:$0xff] 0.0
  $region25: #{gcn_linear_forward.3} parent=0 // pred_fallthru
    _
  %s41 = smul.u32 0, 128
  %s42 = sshra.s32 %s41, 3
  %s43 = sand.u32 %s41, 7
  %s44 = smul.addr %s42, 4
  %s45 = scalar_lea.vmem %s1, %s44
  %v46 = vld [vmem:[%s45] sm:$0xf]
  %v47 = vld [vmem:[%s45 + $0x4] sm:$0xf]
  %v48 = vld [vmem:[%s45 + $0x8] sm:$0xf]
  %v49 = vld [vmem:[%s45 + $0xc] sm:$0xf]
  %v50 = vld [vmem:[%s45 + $0x10] sm:$0xf]
  %v51 = vld [vmem:[%s45 + $0x14] sm:$0xf]
  %v52 = vld [vmem:[%s45 + $0x18] sm:$0xf]
  %v53 = vld [vmem:[%s45 + $0x1c] sm:$0xf]
  %v54 = vld [vmem:[%s45 + $0x20] sm:$0xf]
  %v55 = vld [vmem:[%s45 + $0x24] sm:$0xf]
  %v56 = vld [vmem:[%s45 + $0x28] sm:$0xf]
  %v57 = vld [vmem:[%s45 + $0x2c] sm:$0xf]
  %v58 = vld [vmem:[%s45 + $0x30] sm:$0xf]
  %v59 = vld [vmem:[%s45 + $0x34] sm:$0xf]
  %v60 = vld [vmem:[%s45 + $0x38] sm:$0xf]
  %v61 = vld [vmem:[%s45 + $0x3c] sm:$0xf]
  %v62 = vld [vmem:[#allocation2] sm:$0xff]
  %v63 = vld [vmem:[#allocation2 + $0x8] sm:$0xff]
  %v64 = vld [vmem:[#allocation2 + $0x10] sm:$0xff]
  %v65 = vld [vmem:[#allocation2 + $0x18] sm:$0xff]
  %v66 = vld [vmem:[#allocation2 + $0x20] sm:$0xff]
  %v67 = vld [vmem:[#allocation2 + $0x28] sm:$0xff]
  %v68 = vld [vmem:[#allocation2 + $0x30] sm:$0xff]
  %v69 = vld [vmem:[#allocation2 + $0x38] sm:$0xff]
  %v70 = vld [vmem:[#allocation2 + $0x40] sm:$0xff]
  %v71 = vld [vmem:[#allocation2 + $0x48] sm:$0xff]
  %v72 = vld [vmem:[#allocation2 + $0x50] sm:$0xff]
  %v73 = vld [vmem:[#allocation2 + $0x58] sm:$0xff]
  %v74 = vld [vmem:[#allocation2 + $0x60] sm:$0xff]
  %v75 = vld [vmem:[#allocation2 + $0x68] sm:$0xff]
  %v76 = vld [vmem:[#allocation2 + $0x70] sm:$0xff]
  %v77 = vld [vmem:[#allocation2 + $0x78] sm:$0xff]
  %v78 = vld [vmem:[%s0] sm:$0xf]
  %v79 = vld [vmem:[%s0 + $0x4] sm:$0xf]
  %v80 = vld [vmem:[%s0 + $0x8] sm:$0xf]
  %v81 = vld [vmem:[%s0 + $0xc] sm:$0xf]
  %v82 = vld [vmem:[%s0 + $0x10] sm:$0xf]
  %v83 = vld [vmem:[%s0 + $0x14] sm:$0xf]
  %v84 = vld [vmem:[%s0 + $0x18] sm:$0xf]
  %v85 = vld [vmem:[%s0 + $0x1c] sm:$0xf]
  %v86 = vld [vmem:[%s0 + $0x20] sm:$0xf]
  %v87 = vld [vmem:[%s0 + $0x24] sm:$0xf]
  %v88 = vld [vmem:[%s0 + $0x28] sm:$0xf]
  %v89 = vld [vmem:[%s0 + $0x2c] sm:$0xf]
  %v90 = vld [vmem:[%s0 + $0x30] sm:$0xf]
  %v91 = vld [vmem:[%s0 + $0x34] sm:$0xf]
  %v92 = vld [vmem:[%s0 + $0x38] sm:$0xf]
  %v93 = vld [vmem:[%s0 + $0x3c] sm:$0xf]
  %v110 = vunpack.c.l.b16 %v78
  %v111 = vunpack.c.l.b16 %v79
  %v112 = vunpack.c.l.b16 %v80
  %v113 = vunpack.c.l.b16 %v81
  %v114 = vunpack.c.l.b16 %v82
  %v115 = vunpack.c.l.b16 %v83
  %v116 = vunpack.c.l.b16 %v84
  %v117 = vunpack.c.l.b16 %v85
  %v118 = vunpack.c.l.b16 %v86
  %v119 = vunpack.c.l.b16 %v87
  %v120 = vunpack.c.l.b16 %v88
  %v121 = vunpack.c.l.b16 %v89
  %v122 = vunpack.c.l.b16 %v90
  %v123 = vunpack.c.l.b16 %v91
  %v124 = vunpack.c.l.b16 %v92
  %v125 = vunpack.c.l.b16 %v93
  %v126 = vpack.c.b16 %v111, %v110
  %v127 = vpack.c.b16 %v113, %v112
  %v128 = vpack.c.b16 %v115, %v114
  %v129 = vpack.c.b16 %v117, %v116
  %v130 = vpack.c.b16 %v119, %v118
  %v131 = vpack.c.b16 %v121, %v120
  %v132 = vpack.c.b16 %v123, %v122
  %v133 = vpack.c.b16 %v125, %v124
  %v158 = vunpack.c.l.b16 %v46
  %v159 = vunpack.c.l.b16 %v47
  %v160 = vunpack.c.l.b16 %v48
  %v161 = vunpack.c.l.b16 %v49
  %v162 = vunpack.c.l.b16 %v50
  %v163 = vunpack.c.l.b16 %v51
  %v164 = vunpack.c.l.b16 %v52
  %v165 = vunpack.c.l.b16 %v53
  %v166 = vunpack.c.l.b16 %v54
  %v167 = vunpack.c.l.b16 %v55
  %v168 = vunpack.c.l.b16 %v56
  %v169 = vunpack.c.l.b16 %v57
  %v170 = vunpack.c.l.b16 %v58
  %v171 = vunpack.c.l.b16 %v59
  %v172 = vunpack.c.l.b16 %v60
  %v173 = vunpack.c.l.b16 %v61
  %v174 = vpack.c.b16 %v159, %v158
  %v175 = vpack.c.b16 %v161, %v160
  %v176 = vpack.c.b16 %v163, %v162
  %v177 = vpack.c.b16 %v165, %v164
  %v178 = vpack.c.b16 %v167, %v166
  %v179 = vpack.c.b16 %v169, %v168
  %v180 = vpack.c.b16 %v171, %v170
  %v181 = vpack.c.b16 %v173, %v172
  %190 = vmatprep.subr.bf16.mxu0 0
  %191 = vmatpush1.bf16.msra.mxu0 %v174
  %192 = vmatprep.subr.bf16.mxu0 0
  %193 = vmatpush1.bf16.msra.mxu0 %v175
  %194 = vmatprep.subr.bf16.mxu0 0
  %195 = vmatpush1.bf16.msra.mxu0 %v176
  %196 = vmatprep.subr.bf16.mxu0 0
  %197 = vmatpush1.bf16.msra.mxu0 %v177
  %198 = vmatprep.subr.bf16.mxu0 0
  %199 = vmatpush1.bf16.msra.mxu0 %v178
  %200 = vmatprep.subr.bf16.mxu0 0
  %201 = vmatpush1.bf16.msra.mxu0 %v179
  %202 = vmatprep.subr.bf16.mxu0 0
  %203 = vmatpush1.bf16.msra.mxu0 %v180
  %204 = vmatprep.subr.bf16.mxu0 0
  %205 = vmatpush1.bf16.msra.mxu0 %v181
  %206 = vmatprep.subr.bf16.mxu0 0
  %207 = vmatpush1.bf16.msra.mxu0 0
  %208 = vmatprep.subr.bf16.mxu0 0
  %209 = vmatpush1.bf16.msra.mxu0 0
  %210 = vmatprep.subr.bf16.mxu0 0
  %211 = vmatpush1.bf16.msra.mxu0 0
  %212 = vmatprep.subr.bf16.mxu0 0
  %213 = vmatpush1.bf16.msra.mxu0 0
  %214 = vmatprep.subr.bf16.mxu0 0
  %215 = vmatpush1.bf16.msra.mxu0 0
  %216 = vmatprep.subr.bf16.mxu0 0
  %217 = vmatpush1.bf16.msra.mxu0 0
  %218 = vmatprep.subr.bf16.mxu0 0
  %219 = vmatpush1.bf16.msra.mxu0 0
  %220 = vmatprep.subr.bf16.mxu0 0
  %221 = vmatpush1.bf16.msra.mxu0 0
  %222 = vmatprep.mubr.bf16.mxu0 0
  %223 = vmatmul.mubr.bf16.gmra.mrb[0].mxu0 %v126
  %v224 = vpop.f32.mrb[0].mxu0
  %v225 = vadd.f32 0.0, %v224
  %v226 = vpop.f32.mrb[0].mxu0
  %v227 = vpop.f32.mrb[0].mxu0
  %v228 = vadd.f32 0.0, %v227
  %v229 = vpop.f32.mrb[0].mxu0
  %230 = vmatprep.mubr.bf16.mxu0 0
  %231 = vmatmul.mubr.bf16.gmra.mrb[0].mxu0 %v127
  %v232 = vpop.f32.mrb[0].mxu0
  %v233 = vadd.f32 0.0, %v232
  %v234 = vpop.f32.mrb[0].mxu0
  %v235 = vpop.f32.mrb[0].mxu0
  %v236 = vadd.f32 0.0, %v235
  %v237 = vpop.f32.mrb[0].mxu0
  %238 = vmatprep.mubr.bf16.mxu0 0
  %239 = vmatmul.mubr.bf16.gmra.mrb[0].mxu0 %v128
  %v240 = vpop.f32.mrb[0].mxu0
  %v241 = vadd.f32 0.0, %v240
  %v242 = vpop.f32.mrb[0].mxu0
  %v243 = vpop.f32.mrb[0].mxu0
  %v244 = vadd.f32 0.0, %v243
  %v245 = vpop.f32.mrb[0].mxu0
  %246 = vmatprep.mubr.bf16.mxu0 0
  %247 = vmatmul.mubr.bf16.gmra.mrb[0].mxu0 %v129
  %v248 = vpop.f32.mrb[0].mxu0
  %v249 = vadd.f32 0.0, %v248
  %v250 = vpop.f32.mrb[0].mxu0
  %v251 = vpop.f32.mrb[0].mxu0
  %v252 = vadd.f32 0.0, %v251
  %v253 = vpop.f32.mrb[0].mxu0
  %254 = vmatprep.mubr.bf16.mxu0 0
  %255 = vmatmul.mubr.bf16.gmra.mrb[0].mxu0 %v130
  %v256 = vpop.f32.mrb[0].mxu0
  %v257 = vadd.f32 0.0, %v256
  %v258 = vpop.f32.mrb[0].mxu0
  %v259 = vpop.f32.mrb[0].mxu0
  %v260 = vadd.f32 0.0, %v259
  %v261 = vpop.f32.mrb[0].mxu0
  %262 = vmatprep.mubr.bf16.mxu0 0
  %263 = vmatmul.mubr.bf16.gmra.mrb[0].mxu0 %v131
  %v264 = vpop.f32.mrb[0].mxu0
  %v265 = vadd.f32 0.0, %v264
  %v266 = vpop.f32.mrb[0].mxu0
  %v267 = vpop.f32.mrb[0].mxu0
  %v268 = vadd.f32 0.0, %v267
  %v269 = vpop.f32.mrb[0].mxu0
  %270 = vmatprep.mubr.bf16.mxu0 0
  %271 = vmatmul.mubr.bf16.gmra.mrb[0].mxu0 %v132
  %v272 = vpop.f32.mrb[0].mxu0
  %v273 = vadd.f32 0.0, %v272
  %v274 = vpop.f32.mrb[0].mxu0
  %v275 = vpop.f32.mrb[0].mxu0
  %v276 = vadd.f32 0.0, %v275
  %v277 = vpop.f32.mrb[0].mxu0
  %278 = vmatprep.mubr.bf16.mxu0 0
  %279 = vmatmul.mubr.bf16.gmra.mrb[0].mxu0 %v133
  %v280 = vpop.f32.mrb[0].mxu0
  %v281 = vadd.f32 0.0, %v280
  %v282 = vpop.f32.mrb[0].mxu0
  %v283 = vpop.f32.mrb[0].mxu0
  %v284 = vadd.f32 0.0, %v283
  %v285 = vpop.f32.mrb[0].mxu0
  %286 = vdwg.mxu0
  %v287 = vadd.f32 %v62, %v225
  %v288 = vadd.f32 %v63, %v228
  %v289 = vadd.f32 %v64, %v233
  %v290 = vadd.f32 %v65, %v236
  %v291 = vadd.f32 %v66, %v241
  %v292 = vadd.f32 %v67, %v244
  %v293 = vadd.f32 %v68, %v249
  %v294 = vadd.f32 %v69, %v252
  %v295 = vadd.f32 %v70, %v257
  %v296 = vadd.f32 %v71, %v260
  %v297 = vadd.f32 %v72, %v265
  %v298 = vadd.f32 %v73, %v268
  %v299 = vadd.f32 %v74, %v273
  %v300 = vadd.f32 %v75, %v276
  %v301 = vadd.f32 %v76, %v281
  %v302 = vadd.f32 %v77, %v284
  %303 = vst [vmem:[#allocation2] sm:$0xff] %v287
  %304 = vst [vmem:[#allocation2 + $0x8] sm:$0xff] %v288
  %305 = vst [vmem:[#allocation2 + $0x10] sm:$0xff] %v289
  %306 = vst [vmem:[#allocation2 + $0x18] sm:$0xff] %v290
  %307 = vst [vmem:[#allocation2 + $0x20] sm:$0xff] %v291
  %308 = vst [vmem:[#allocation2 + $0x28] sm:$0xff] %v292
  %309 = vst [vmem:[#allocation2 + $0x30] sm:$0xff] %v293
  %310 = vst [vmem:[#allocation2 + $0x38] sm:$0xff] %v294
  %311 = vst [vmem:[#allocation2 + $0x40] sm:$0xff] %v295
  %312 = vst [vmem:[#allocation2 + $0x48] sm:$0xff] %v296
  %313 = vst [vmem:[#allocation2 + $0x50] sm:$0xff] %v297
  %314 = vst [vmem:[#allocation2 + $0x58] sm:$0xff] %v298
  %315 = vst [vmem:[#allocation2 + $0x60] sm:$0xff] %v299
  %316 = vst [vmem:[#allocation2 + $0x68] sm:$0xff] %v300
  %317 = vst [vmem:[#allocation2 + $0x70] sm:$0xff] %v301
  %318 = vst [vmem:[#allocation2 + $0x78] sm:$0xff] %v302
  // Predicated region
  $region26: #{gcn_linear_forward.3} parent=0 // pred_check
    %p319 = pneg %p21
  $region27: #{gcn_linear_forward.3} parent=0 // pred_check_branch
    %321 = sbr.rel (%p319) target = $region29
  $region28: #{gcn_linear_forward.3} parent=0 // pred_region
    %v322 = vld [vmem:[#allocation2] sm:$0xff]
    %v323 = vld [vmem:[#allocation2 + $0x8] sm:$0xff]
    %v324 = vld [vmem:[#allocation2 + $0x10] sm:$0xff]
    %v325 = vld [vmem:[#allocation2 + $0x18] sm:$0xff]
    %v326 = vld [vmem:[#allocation2 + $0x20] sm:$0xff]
    %v327 = vld [vmem:[#allocation2 + $0x28] sm:$0xff]
    %v328 = vld [vmem:[#allocation2 + $0x30] sm:$0xff]
    %v329 = vld [vmem:[#allocation2 + $0x38] sm:$0xff]
    %v330 = vld [vmem:[#allocation2 + $0x40] sm:$0xff]
    %v331 = vld [vmem:[#allocation2 + $0x48] sm:$0xff]
    %v332 = vld [vmem:[#allocation2 + $0x50] sm:$0xff]
    %v333 = vld [vmem:[#allocation2 + $0x58] sm:$0xff]
    %v334 = vld [vmem:[#allocation2 + $0x60] sm:$0xff]
    %v335 = vld [vmem:[#allocation2 + $0x68] sm:$0xff]
    %v336 = vld [vmem:[#allocation2 + $0x70] sm:$0xff]
    %v337 = vld [vmem:[#allocation2 + $0x78] sm:$0xff]
    %v338 = vld [vmem:[%s2] sm:$0x1]
    %v340 = vlaneseq
    %v341 = vshrl.u32 %v340, 7
    %v342 = vsub.s32 0, %v341
    %v343 = vrot.slane %v338, %v342
    %v345 = vadd.f32 %v322, %v343
    %v346 = vadd.f32 %v323, %v343
    %v347 = vadd.f32 %v324, %v343
    %v348 = vadd.f32 %v325, %v343
    %v349 = vadd.f32 %v326, %v343
    %v350 = vadd.f32 %v327, %v343
    %v351 = vadd.f32 %v328, %v343
    %v352 = vadd.f32 %v329, %v343
    %v353 = vadd.f32 %v330, %v343
    %v354 = vadd.f32 %v331, %v343
    %v355 = vadd.f32 %v332, %v343
    %v356 = vadd.f32 %v333, %v343
    %v357 = vadd.f32 %v334, %v343
    %v358 = vadd.f32 %v335, %v343
    %v359 = vadd.f32 %v336, %v343
    %v360 = vadd.f32 %v337, %v343
    %v361 = vpack.c.bf16 %v346, %v345
    %v362 = vpack.c.bf16 %v348, %v347
    %v363 = vpack.c.bf16 %v350, %v349
    %v364 = vpack.c.bf16 %v352, %v351
    %v365 = vpack.c.bf16 %v354, %v353
    %v366 = vpack.c.bf16 %v356, %v355
    %v367 = vpack.c.bf16 %v358, %v357
    %v368 = vpack.c.bf16 %v360, %v359
    %v369 = vld [vmem:[%s3] sm:$0xf]
    %v370 = vld [vmem:[%s3 + $0x4] sm:$0xf]
    %v371 = vld [vmem:[%s3 + $0x8] sm:$0xf]
    %v372 = vld [vmem:[%s3 + $0xc] sm:$0xf]
    %v373 = vld [vmem:[%s3 + $0x10] sm:$0xf]
    %v374 = vld [vmem:[%s3 + $0x14] sm:$0xf]
    %v375 = vld [vmem:[%s3 + $0x18] sm:$0xf]
    %v376 = vld [vmem:[%s3 + $0x1c] sm:$0xf]
    %v377 = vld [vmem:[%s3 + $0x20] sm:$0xf]
    %v378 = vld [vmem:[%s3 + $0x24] sm:$0xf]
    %v379 = vld [vmem:[%s3 + $0x28] sm:$0xf]
    %v380 = vld [vmem:[%s3 + $0x2c] sm:$0xf]
    %v381 = vld [vmem:[%s3 + $0x30] sm:$0xf]
    %v382 = vld [vmem:[%s3 + $0x34] sm:$0xf]
    %v383 = vld [vmem:[%s3 + $0x38] sm:$0xf]
    %v384 = vld [vmem:[%s3 + $0x3c] sm:$0xf]
    %v385 = vld [vmem:[%s4] sm:$0x1]
    %v387 = vlaneseq
    %v388 = vshrl.u32 %v387, 7
    %v389 = vsub.s32 0, %v388
    %v390 = vrot.slane %v385, %v389
    %v408 = vunpack.c.l.b16 %v369
    %v409 = vunpack.c.l.b16 %v370
    %v410 = vunpack.c.l.b16 %v371
    %v411 = vunpack.c.l.b16 %v372
    %v412 = vunpack.c.l.b16 %v373
    %v413 = vunpack.c.l.b16 %v374
    %v414 = vunpack.c.l.b16 %v375
    %v415 = vunpack.c.l.b16 %v376
    %v416 = vunpack.c.l.b16 %v377
    %v417 = vunpack.c.l.b16 %v378
    %v418 = vunpack.c.l.b16 %v379
    %v419 = vunpack.c.l.b16 %v380
    %v420 = vunpack.c.l.b16 %v381
    %v421 = vunpack.c.l.b16 %v382
    %v422 = vunpack.c.l.b16 %v383
    %v423 = vunpack.c.l.b16 %v384
    %v424 = vpack.c.b16 %v409, %v408
    %v425 = vpack.c.b16 %v411, %v410
    %v426 = vpack.c.b16 %v413, %v412
    %v427 = vpack.c.b16 %v415, %v414
    %v428 = vpack.c.b16 %v417, %v416
    %v429 = vpack.c.b16 %v419, %v418
    %v430 = vpack.c.b16 %v421, %v420
    %v431 = vpack.c.b16 %v423, %v422
    %440 = vmatprep.subr.bf16.mxu0 0
    %441 = vmatpush1.bf16.msra.mxu0 %v424
    %442 = vmatprep.subr.bf16.mxu0 0
    %443 = vmatpush1.bf16.msra.mxu0 %v425
    %444 = vmatprep.subr.bf16.mxu0 0
    %445 = vmatpush1.bf16.msra.mxu0 %v426
    %446 = vmatprep.subr.bf16.mxu0 0
    %447 = vmatpush1.bf16.msra.mxu0 %v427
    %448 = vmatprep.subr.bf16.mxu0 0
    %449 = vmatpush1.bf16.msra.mxu0 %v428
    %450 = vmatprep.subr.bf16.mxu0 0
    %451 = vmatpush1.bf16.msra.mxu0 %v429
    %452 = vmatprep.subr.bf16.mxu0 0
    %453 = vmatpush1.bf16.msra.mxu0 %v430
    %454 = vmatprep.subr.bf16.mxu0 0
    %455 = vmatpush1.bf16.msra.mxu0 %v431
    %456 = vmatprep.subr.bf16.mxu0 0
    %457 = vmatpush1.bf16.msra.mxu0 0
    %458 = vmatprep.subr.bf16.mxu0 0
    %459 = vmatpush1.bf16.msra.mxu0 0
    %460 = vmatprep.subr.bf16.mxu0 0
    %461 = vmatpush1.bf16.msra.mxu0 0
    %462 = vmatprep.subr.bf16.mxu0 0
    %463 = vmatpush1.bf16.msra.mxu0 0
    %464 = vmatprep.subr.bf16.mxu0 0
    %465 = vmatpush1.bf16.msra.mxu0 0
    %466 = vmatprep.subr.bf16.mxu0 0
    %467 = vmatpush1.bf16.msra.mxu0 0
    %468 = vmatprep.subr.bf16.mxu0 0
    %469 = vmatpush1.bf16.msra.mxu0 0
    %470 = vmatprep.subr.bf16.mxu0 0
    %471 = vmatpush1.bf16.msra.mxu0 0
    %472 = vmatprep.mubr.bf16.mxu0 0
    %473 = vmatmul.mubr.bf16.gmra.mrb[0].mxu0 %v361
    %v474 = vpop.f32.mrb[0].mxu0
    %v475 = vadd.f32 %v390, %v474
    %v476 = vpop.f32.mrb[0].mxu0
    %v477 = vpop.f32.mrb[0].mxu0
    %v478 = vadd.f32 %v390, %v477
    %v479 = vpop.f32.mrb[0].mxu0
    %480 = vmatprep.mubr.bf16.mxu0 0
    %481 = vmatmul.mubr.bf16.gmra.mrb[0].mxu0 %v362
    %v482 = vpop.f32.mrb[0].mxu0
    %v483 = vadd.f32 %v390, %v482
    %v484 = vpop.f32.mrb[0].mxu0
    %v485 = vpop.f32.mrb[0].mxu0
    %v486 = vadd.f32 %v390, %v485
    %v487 = vpop.f32.mrb[0].mxu0
    %488 = vmatprep.mubr.bf16.mxu0 0
    %489 = vmatmul.mubr.bf16.gmra.mrb[0].mxu0 %v363
    %v490 = vpop.f32.mrb[0].mxu0
    %v491 = vadd.f32 %v390, %v490
    %v492 = vpop.f32.mrb[0].mxu0
    %v493 = vpop.f32.mrb[0].mxu0
    %v494 = vadd.f32 %v390, %v493
    %v495 = vpop.f32.mrb[0].mxu0
    %496 = vmatprep.mubr.bf16.mxu0 0
    %497 = vmatmul.mubr.bf16.gmra.mrb[0].mxu0 %v364
    %v498 = vpop.f32.mrb[0].mxu0
    %v499 = vadd.f32 %v390, %v498
    %v500 = vpop.f32.mrb[0].mxu0
    %v501 = vpop.f32.mrb[0].mxu0
    %v502 = vadd.f32 %v390, %v501
    %v503 = vpop.f32.mrb[0].mxu0
    %504 = vmatprep.mubr.bf16.mxu0 0
    %505 = vmatmul.mubr.bf16.gmra.mrb[0].mxu0 %v365
    %v506 = vpop.f32.mrb[0].mxu0
    %v507 = vadd.f32 %v390, %v506
    %v508 = vpop.f32.mrb[0].mxu0
    %v509 = vpop.f32.mrb[0].mxu0
    %v510 = vadd.f32 %v390, %v509
    %v511 = vpop.f32.mrb[0].mxu0
    %512 = vmatprep.mubr.bf16.mxu0 0
    %513 = vmatmul.mubr.bf16.gmra.mrb[0].mxu0 %v366
    %v514 = vpop.f32.mrb[0].mxu0
    %v515 = vadd.f32 %v390, %v514
    %v516 = vpop.f32.mrb[0].mxu0
    %v517 = vpop.f32.mrb[0].mxu0
    %v518 = vadd.f32 %v390, %v517
    %v519 = vpop.f32.mrb[0].mxu0
    %520 = vmatprep.mubr.bf16.mxu0 0
    %521 = vmatmul.mubr.bf16.gmra.mrb[0].mxu0 %v367
    %v522 = vpop.f32.mrb[0].mxu0
    %v523 = vadd.f32 %v390, %v522
    %v524 = vpop.f32.mrb[0].mxu0
    %v525 = vpop.f32.mrb[0].mxu0
    %v526 = vadd.f32 %v390, %v525
    %v527 = vpop.f32.mrb[0].mxu0
    %528 = vmatprep.mubr.bf16.mxu0 0
    %529 = vmatmul.mubr.bf16.gmra.mrb[0].mxu0 %v368
    %v530 = vpop.f32.mrb[0].mxu0
    %v531 = vadd.f32 %v390, %v530
    %v532 = vpop.f32.mrb[0].mxu0
    %v533 = vpop.f32.mrb[0].mxu0
    %v534 = vadd.f32 %v390, %v533
    %v535 = vpop.f32.mrb[0].mxu0
    %536 = vdwg.mxu0
    %537 = vst [vmem:[%s5] sm:$0xff] %v475
    %538 = vst [vmem:[%s5 + $0x8] sm:$0xff] %v478
    %539 = vst [vmem:[%s5 + $0x10] sm:$0xff] %v483
    %540 = vst [vmem:[%s5 + $0x18] sm:$0xff] %v486
    %541 = vst [vmem:[%s5 + $0x20] sm:$0xff] %v491
    %542 = vst [vmem:[%s5 + $0x28] sm:$0xff] %v494
    %543 = vst [vmem:[%s5 + $0x30] sm:$0xff] %v499
    %544 = vst [vmem:[%s5 + $0x38] sm:$0xff] %v502
    %545 = vst [vmem:[%s5 + $0x40] sm:$0xff] %v507
    %546 = vst [vmem:[%s5 + $0x48] sm:$0xff] %v510
    %547 = vst [vmem:[%s5 + $0x50] sm:$0xff] %v515
    %548 = vst [vmem:[%s5 + $0x58] sm:$0xff] %v518
    %549 = vst [vmem:[%s5 + $0x60] sm:$0xff] %v523
    %550 = vst [vmem:[%s5 + $0x68] sm:$0xff] %v526
    %551 = vst [vmem:[%s5 + $0x70] sm:$0xff] %v531
    %552 = vst [vmem:[%s5 + $0x78] sm:$0xff] %v534
  $region29: #{gcn_linear_forward.3} parent=0 // pred_fallthru
    _
  // Predicated region
  $region30: #{gcn_linear_forward.3} parent=0 // pred_check
    _
  $region31: #{gcn_linear_forward.3} parent=0 // pred_check_branch
    %554 = sbr.rel (0) target = $region33
  $region32: #{gcn_linear_forward.3} parent=0 // pred_region
    _
  $region33: #{gcn_linear_forward.3} parent=0 // pred_fallthru
    _
  // Predicated region
  $region34: #{gcn_linear_forward.3} parent=0 // pred_check
    _
  $region35: #{gcn_linear_forward.3} parent=0 // pred_check_branch
    %556 = sbr.rel (0) target = $region37
  $region36: #{gcn_linear_forward.3} parent=0 // pred_region
    _
  $region37: #{gcn_linear_forward.3} parent=0 // pred_fallthru
    _

// kernel: gcn_linear_forward.2
$region0: #{gcn_linear_forward.2}
  #allocation0 [shape = 'u32[]', space=smem, size = 0x4, offset = 0x4, fixed_abs, tag = 'smem constant byte address 0x4 - core index']
  #allocation1 [shape = 'u32[144,128]{1,0:T(1,128)}', space=vmem, size = 0x12000, scoped, tag = 'internal scratch']
  #allocation2 [shape = 'f32[128,128]{1,0:T(8,128)}', space=vmem, size = 0x10000, scoped, tag = 'scratch operand']
  %s0 = inlined_call_operand.vmem [shape: bf16[128,128], index: 0, kind: input, shape index: {}]
  %s1 = inlined_call_operand.vmem [shape: bf16[128,128], index: 1, kind: input, shape index: {}]
  %s2 = inlined_call_operand.vmem [shape: f32[1,128], index: 2, kind: input, shape index: {}]
  %s3 = inlined_call_operand.vmem [shape: bf16[128,128], index: 3, kind: input, shape index: {}]
  %s4 = inlined_call_operand.vmem [shape: bf16[128,128], index: 4, kind: output, shape index: {}]
  %s5 = sld [smem:[#allocation0]]
  $region34: #{gcn_linear_forward.2} parent=0
    _
  %s7 = ssub.s32 1, %s5
  %s8 = scalar_select 0, %s7, %s5
  // Predicated region
  $region2: #{gcn_linear_forward.2} parent=0 // pred_check
    _
  $region3: #{gcn_linear_forward.2} parent=0 // pred_check_branch
    %10 = sbr.rel (0) target = $region5
  $region4: #{gcn_linear_forward.2} parent=0 // pred_region
    _
  $region5: #{gcn_linear_forward.2} parent=0 // pred_fallthru
    _
  // Predicated region
  $region6: #{gcn_linear_forward.2} parent=0 // pred_check
    _
  $region7: #{gcn_linear_forward.2} parent=0 // pred_check_branch
    %12 = sbr.rel (0) target = $region9
  $region8: #{gcn_linear_forward.2} parent=0 // pred_region
    _
  $region9: #{gcn_linear_forward.2} parent=0 // pred_fallthru
    _
  // Predicated region
  $region10: #{gcn_linear_forward.2} parent=0 // pred_check
    _
  $region11: #{gcn_linear_forward.2} parent=0 // pred_check_branch
    %14 = sbr.rel (0) target = $region13
  $region12: #{gcn_linear_forward.2} parent=0 // pred_region
    _
  $region13: #{gcn_linear_forward.2} parent=0 // pred_fallthru
    _
  // Predicated region
  $region14: #{gcn_linear_forward.2} parent=0 // pred_check
    _
  $region15: #{gcn_linear_forward.2} parent=0 // pred_check_branch
    %16 = sbr.rel (0) target = $region17
  $region16: #{gcn_linear_forward.2} parent=0 // pred_region
    _
  $region17: #{gcn_linear_forward.2} parent=0 // pred_fallthru
    _
  %p18 = scmp.eq.s32.totalorder 0, 0
  // Predicated region
  $region18: #{gcn_linear_forward.2} parent=0 // pred_check
    %p19 = pneg %p18
  $region19: #{gcn_linear_forward.2} parent=0 // pred_check_branch
    %21 = sbr.rel (%p19) target = $region21
  $region20: #{gcn_linear_forward.2} parent=0 // pred_region
    %22 = vst [vmem:[#allocation2] sm:$0xff] 0.0
    %23 = vst [vmem:[#allocation2 + $0x8] sm:$0xff] 0.0
    %24 = vst [vmem:[#allocation2 + $0x10] sm:$0xff] 0.0
    %25 = vst [vmem:[#allocation2 + $0x18] sm:$0xff] 0.0
    %26 = vst [vmem:[#allocation2 + $0x20] sm:$0xff] 0.0
    %27 = vst [vmem:[#allocation2 + $0x28] sm:$0xff] 0.0
    %28 = vst [vmem:[#allocation2 + $0x30] sm:$0xff] 0.0
    %29 = vst [vmem:[#allocation2 + $0x38] sm:$0xff] 0.0
    %30 = vst [vmem:[#allocation2 + $0x40] sm:$0xff] 0.0
    %31 = vst [vmem:[#allocation2 + $0x48] sm:$0xff] 0.0
    %32 = vst [vmem:[#allocation2 + $0x50] sm:$0xff] 0.0
    %33 = vst [vmem:[#allocation2 + $0x58] sm:$0xff] 0.0
    %34 = vst [vmem:[#allocation2 + $0x60] sm:$0xff] 0.0
    %35 = vst [vmem:[#allocation2 + $0x68] sm:$0xff] 0.0
    %36 = vst [vmem:[#allocation2 + $0x70] sm:$0xff] 0.0
    %37 = vst [vmem:[#allocation2 + $0x78] sm:$0xff] 0.0
  $region21: #{gcn_linear_forward.2} parent=0 // pred_fallthru
    _
  %s38 = smul.u32 0, 128
  %s39 = sshra.s32 %s38, 3
  %s40 = sand.u32 %s38, 7
  %s41 = smul.addr %s39, 4
  %s42 = scalar_lea.vmem %s1, %s41
  %v43 = vld [vmem:[%s42] sm:$0xf]
  %v44 = vld [vmem:[%s42 + $0x4] sm:$0xf]
  %v45 = vld [vmem:[%s42 + $0x8] sm:$0xf]
  %v46 = vld [vmem:[%s42 + $0xc] sm:$0xf]
  %v47 = vld [vmem:[%s42 + $0x10] sm:$0xf]
  %v48 = vld [vmem:[%s42 + $0x14] sm:$0xf]
  %v49 = vld [vmem:[%s42 + $0x18] sm:$0xf]
  %v50 = vld [vmem:[%s42 + $0x1c] sm:$0xf]
  %v51 = vld [vmem:[%s42 + $0x20] sm:$0xf]
  %v52 = vld [vmem:[%s42 + $0x24] sm:$0xf]
  %v53 = vld [vmem:[%s42 + $0x28] sm:$0xf]
  %v54 = vld [vmem:[%s42 + $0x2c] sm:$0xf]
  %v55 = vld [vmem:[%s42 + $0x30] sm:$0xf]
  %v56 = vld [vmem:[%s42 + $0x34] sm:$0xf]
  %v57 = vld [vmem:[%s42 + $0x38] sm:$0xf]
  %v58 = vld [vmem:[%s42 + $0x3c] sm:$0xf]
  %v59 = vld [vmem:[#allocation2] sm:$0xff]
  %v60 = vld [vmem:[#allocation2 + $0x8] sm:$0xff]
  %v61 = vld [vmem:[#allocation2 + $0x10] sm:$0xff]
  %v62 = vld [vmem:[#allocation2 + $0x18] sm:$0xff]
  %v63 = vld [vmem:[#allocation2 + $0x20] sm:$0xff]
  %v64 = vld [vmem:[#allocation2 + $0x28] sm:$0xff]
  %v65 = vld [vmem:[#allocation2 + $0x30] sm:$0xff]
  %v66 = vld [vmem:[#allocation2 + $0x38] sm:$0xff]
  %v67 = vld [vmem:[#allocation2 + $0x40] sm:$0xff]
  %v68 = vld [vmem:[#allocation2 + $0x48] sm:$0xff]
  %v69 = vld [vmem:[#allocation2 + $0x50] sm:$0xff]
  %v70 = vld [vmem:[#allocation2 + $0x58] sm:$0xff]
  %v71 = vld [vmem:[#allocation2 + $0x60] sm:$0xff]
  %v72 = vld [vmem:[#allocation2 + $0x68] sm:$0xff]
  %v73 = vld [vmem:[#allocation2 + $0x70] sm:$0xff]
  %v74 = vld [vmem:[#allocation2 + $0x78] sm:$0xff]
  %v75 = vld [vmem:[%s0] sm:$0xf]
  %v76 = vld [vmem:[%s0 + $0x4] sm:$0xf]
  %v77 = vld [vmem:[%s0 + $0x8] sm:$0xf]
  %v78 = vld [vmem:[%s0 + $0xc] sm:$0xf]
  %v79 = vld [vmem:[%s0 + $0x10] sm:$0xf]
  %v80 = vld [vmem:[%s0 + $0x14] sm:$0xf]
  %v81 = vld [vmem:[%s0 + $0x18] sm:$0xf]
  %v82 = vld [vmem:[%s0 + $0x1c] sm:$0xf]
  %v83 = vld [vmem:[%s0 + $0x20] sm:$0xf]
  %v84 = vld [vmem:[%s0 + $0x24] sm:$0xf]
  %v85 = vld [vmem:[%s0 + $0x28] sm:$0xf]
  %v86 = vld [vmem:[%s0 + $0x2c] sm:$0xf]
  %v87 = vld [vmem:[%s0 + $0x30] sm:$0xf]
  %v88 = vld [vmem:[%s0 + $0x34] sm:$0xf]
  %v89 = vld [vmem:[%s0 + $0x38] sm:$0xf]
  %v90 = vld [vmem:[%s0 + $0x3c] sm:$0xf]
  %v107 = vunpack.c.l.b16 %v75
  %v108 = vunpack.c.l.b16 %v76
  %v109 = vunpack.c.l.b16 %v77
  %v110 = vunpack.c.l.b16 %v78
  %v111 = vunpack.c.l.b16 %v79
  %v112 = vunpack.c.l.b16 %v80
  %v113 = vunpack.c.l.b16 %v81
  %v114 = vunpack.c.l.b16 %v82
  %v115 = vunpack.c.l.b16 %v83
  %v116 = vunpack.c.l.b16 %v84
  %v117 = vunpack.c.l.b16 %v85
  %v118 = vunpack.c.l.b16 %v86
  %v119 = vunpack.c.l.b16 %v87
  %v120 = vunpack.c.l.b16 %v88
  %v121 = vunpack.c.l.b16 %v89
  %v122 = vunpack.c.l.b16 %v90
  %v123 = vpack.c.b16 %v108, %v107
  %v124 = vpack.c.b16 %v110, %v109
  %v125 = vpack.c.b16 %v112, %v111
  %v126 = vpack.c.b16 %v114, %v113
  %v127 = vpack.c.b16 %v116, %v115
  %v128 = vpack.c.b16 %v118, %v117
  %v129 = vpack.c.b16 %v120, %v119
  %v130 = vpack.c.b16 %v122, %v121
  %v155 = vunpack.c.l.b16 %v43
  %v156 = vunpack.c.l.b16 %v44
  %v157 = vunpack.c.l.b16 %v45
  %v158 = vunpack.c.l.b16 %v46
  %v159 = vunpack.c.l.b16 %v47
  %v160 = vunpack.c.l.b16 %v48
  %v161 = vunpack.c.l.b16 %v49
  %v162 = vunpack.c.l.b16 %v50
  %v163 = vunpack.c.l.b16 %v51
  %v164 = vunpack.c.l.b16 %v52
  %v165 = vunpack.c.l.b16 %v53
  %v166 = vunpack.c.l.b16 %v54
  %v167 = vunpack.c.l.b16 %v55
  %v168 = vunpack.c.l.b16 %v56
  %v169 = vunpack.c.l.b16 %v57
  %v170 = vunpack.c.l.b16 %v58
  %v171 = vpack.c.b16 %v156, %v155
  %v172 = vpack.c.b16 %v158, %v157
  %v173 = vpack.c.b16 %v160, %v159
  %v174 = vpack.c.b16 %v162, %v161
  %v175 = vpack.c.b16 %v164, %v163
  %v176 = vpack.c.b16 %v166, %v165
  %v177 = vpack.c.b16 %v168, %v167
  %v178 = vpack.c.b16 %v170, %v169
  %187 = vmatprep.subr.bf16.mxu0 0
  %188 = vmatpush1.bf16.msra.mxu0 %v171
  %189 = vmatprep.subr.bf16.mxu0 0
  %190 = vmatpush1.bf16.msra.mxu0 %v172
  %191 = vmatprep.subr.bf16.mxu0 0
  %192 = vmatpush1.bf16.msra.mxu0 %v173
  %193 = vmatprep.subr.bf16.mxu0 0
  %194 = vmatpush1.bf16.msra.mxu0 %v174
  %195 = vmatprep.subr.bf16.mxu0 0
  %196 = vmatpush1.bf16.msra.mxu0 %v175
  %197 = vmatprep.subr.bf16.mxu0 0
  %198 = vmatpush1.bf16.msra.mxu0 %v176
  %199 = vmatprep.subr.bf16.mxu0 0
  %200 = vmatpush1.bf16.msra.mxu0 %v177
  %201 = vmatprep.subr.bf16.mxu0 0
  %202 = vmatpush1.bf16.msra.mxu0 %v178
  %203 = vmatprep.subr.bf16.mxu0 0
  %204 = vmatpush1.bf16.msra.mxu0 0
  %205 = vmatprep.subr.bf16.mxu0 0
  %206 = vmatpush1.bf16.msra.mxu0 0
  %207 = vmatprep.subr.bf16.mxu0 0
  %208 = vmatpush1.bf16.msra.mxu0 0
  %209 = vmatprep.subr.bf16.mxu0 0
  %210 = vmatpush1.bf16.msra.mxu0 0
  %211 = vmatprep.subr.bf16.mxu0 0
  %212 = vmatpush1.bf16.msra.mxu0 0
  %213 = vmatprep.subr.bf16.mxu0 0
  %214 = vmatpush1.bf16.msra.mxu0 0
  %215 = vmatprep.subr.bf16.mxu0 0
  %216 = vmatpush1.bf16.msra.mxu0 0
  %217 = vmatprep.subr.bf16.mxu0 0
  %218 = vmatpush1.bf16.msra.mxu0 0
  %219 = vmatprep.mubr.bf16.mxu0 0
  %220 = vmatmul.mubr.bf16.gmra.mrb[0].mxu0 %v123
  %v221 = vpop.f32.mrb[0].mxu0
  %v222 = vadd.f32 0.0, %v221
  %v223 = vpop.f32.mrb[0].mxu0
  %v224 = vpop.f32.mrb[0].mxu0
  %v225 = vadd.f32 0.0, %v224
  %v226 = vpop.f32.mrb[0].mxu0
  %227 = vmatprep.mubr.bf16.mxu0 0
  %228 = vmatmul.mubr.bf16.gmra.mrb[0].mxu0 %v124
  %v229 = vpop.f32.mrb[0].mxu0
  %v230 = vadd.f32 0.0, %v229
  %v231 = vpop.f32.mrb[0].mxu0
  %v232 = vpop.f32.mrb[0].mxu0
  %v233 = vadd.f32 0.0, %v232
  %v234 = vpop.f32.mrb[0].mxu0
  %235 = vmatprep.mubr.bf16.mxu0 0
  %236 = vmatmul.mubr.bf16.gmra.mrb[0].mxu0 %v125
  %v237 = vpop.f32.mrb[0].mxu0
  %v238 = vadd.f32 0.0, %v237
  %v239 = vpop.f32.mrb[0].mxu0
  %v240 = vpop.f32.mrb[0].mxu0
  %v241 = vadd.f32 0.0, %v240
  %v242 = vpop.f32.mrb[0].mxu0
  %243 = vmatprep.mubr.bf16.mxu0 0
  %244 = vmatmul.mubr.bf16.gmra.mrb[0].mxu0 %v126
  %v245 = vpop.f32.mrb[0].mxu0
  %v246 = vadd.f32 0.0, %v245
  %v247 = vpop.f32.mrb[0].mxu0
  %v248 = vpop.f32.mrb[0].mxu0
  %v249 = vadd.f32 0.0, %v248
  %v250 = vpop.f32.mrb[0].mxu0
  %251 = vmatprep.mubr.bf16.mxu0 0
  %252 = vmatmul.mubr.bf16.gmra.mrb[0].mxu0 %v127
  %v253 = vpop.f32.mrb[0].mxu0
  %v254 = vadd.f32 0.0, %v253
  %v255 = vpop.f32.mrb[0].mxu0
  %v256 = vpop.f32.mrb[0].mxu0
  %v257 = vadd.f32 0.0, %v256
  %v258 = vpop.f32.mrb[0].mxu0
  %259 = vmatprep.mubr.bf16.mxu0 0
  %260 = vmatmul.mubr.bf16.gmra.mrb[0].mxu0 %v128
  %v261 = vpop.f32.mrb[0].mxu0
  %v262 = vadd.f32 0.0, %v261
  %v263 = vpop.f32.mrb[0].mxu0
  %v264 = vpop.f32.mrb[0].mxu0
  %v265 = vadd.f32 0.0, %v264
  %v266 = vpop.f32.mrb[0].mxu0
  %267 = vmatprep.mubr.bf16.mxu0 0
  %268 = vmatmul.mubr.bf16.gmra.mrb[0].mxu0 %v129
  %v269 = vpop.f32.mrb[0].mxu0
  %v270 = vadd.f32 0.0, %v269
  %v271 = vpop.f32.mrb[0].mxu0
  %v272 = vpop.f32.mrb[0].mxu0
  %v273 = vadd.f32 0.0, %v272
  %v274 = vpop.f32.mrb[0].mxu0
  %275 = vmatprep.mubr.bf16.mxu0 0
  %276 = vmatmul.mubr.bf16.gmra.mrb[0].mxu0 %v130
  %v277 = vpop.f32.mrb[0].mxu0
  %v278 = vadd.f32 0.0, %v277
  %v279 = vpop.f32.mrb[0].mxu0
  %v280 = vpop.f32.mrb[0].mxu0
  %v281 = vadd.f32 0.0, %v280
  %v282 = vpop.f32.mrb[0].mxu0
  %283 = vdwg.mxu0
  %v284 = vadd.f32 %v59, %v222
  %v285 = vadd.f32 %v60, %v225
  %v286 = vadd.f32 %v61, %v230
  %v287 = vadd.f32 %v62, %v233
  %v288 = vadd.f32 %v63, %v238
  %v289 = vadd.f32 %v64, %v241
  %v290 = vadd.f32 %v65, %v246
  %v291 = vadd.f32 %v66, %v249
  %v292 = vadd.f32 %v67, %v254
  %v293 = vadd.f32 %v68, %v257
  %v294 = vadd.f32 %v69, %v262
  %v295 = vadd.f32 %v70, %v265
  %v296 = vadd.f32 %v71, %v270
  %v297 = vadd.f32 %v72, %v273
  %v298 = vadd.f32 %v73, %v278
  %v299 = vadd.f32 %v74, %v281
  %300 = vst [vmem:[#allocation2] sm:$0xff] %v284
  %301 = vst [vmem:[#allocation2 + $0x8] sm:$0xff] %v285
  %302 = vst [vmem:[#allocation2 + $0x10] sm:$0xff] %v286
  %303 = vst [vmem:[#allocation2 + $0x18] sm:$0xff] %v287
  %304 = vst [vmem:[#allocation2 + $0x20] sm:$0xff] %v288
  %305 = vst [vmem:[#allocation2 + $0x28] sm:$0xff] %v289
  %306 = vst [vmem:[#allocation2 + $0x30] sm:$0xff] %v290
  %307 = vst [vmem:[#allocation2 + $0x38] sm:$0xff] %v291
  %308 = vst [vmem:[#allocation2 + $0x40] sm:$0xff] %v292
  %309 = vst [vmem:[#allocation2 + $0x48] sm:$0xff] %v293
  %310 = vst [vmem:[#allocation2 + $0x50] sm:$0xff] %v294
  %311 = vst [vmem:[#allocation2 + $0x58] sm:$0xff] %v295
  %312 = vst [vmem:[#allocation2 + $0x60] sm:$0xff] %v296
  %313 = vst [vmem:[#allocation2 + $0x68] sm:$0xff] %v297
  %314 = vst [vmem:[#allocation2 + $0x70] sm:$0xff] %v298
  %315 = vst [vmem:[#allocation2 + $0x78] sm:$0xff] %v299
  // Predicated region
  $region22: #{gcn_linear_forward.2} parent=0 // pred_check
    %p316 = pneg %p18
  $region23: #{gcn_linear_forward.2} parent=0 // pred_check_branch
    %318 = sbr.rel (%p316) target = $region25
  $region24: #{gcn_linear_forward.2} parent=0 // pred_region
    %v319 = vld [vmem:[#allocation2] sm:$0xff]
    %v320 = vld [vmem:[#allocation2 + $0x8] sm:$0xff]
    %v321 = vld [vmem:[#allocation2 + $0x10] sm:$0xff]
    %v322 = vld [vmem:[#allocation2 + $0x18] sm:$0xff]
    %v323 = vld [vmem:[#allocation2 + $0x20] sm:$0xff]
    %v324 = vld [vmem:[#allocation2 + $0x28] sm:$0xff]
    %v325 = vld [vmem:[#allocation2 + $0x30] sm:$0xff]
    %v326 = vld [vmem:[#allocation2 + $0x38] sm:$0xff]
    %v327 = vld [vmem:[#allocation2 + $0x40] sm:$0xff]
    %v328 = vld [vmem:[#allocation2 + $0x48] sm:$0xff]
    %v329 = vld [vmem:[#allocation2 + $0x50] sm:$0xff]
    %v330 = vld [vmem:[#allocation2 + $0x58] sm:$0xff]
    %v331 = vld [vmem:[#allocation2 + $0x60] sm:$0xff]
    %v332 = vld [vmem:[#allocation2 + $0x68] sm:$0xff]
    %v333 = vld [vmem:[#allocation2 + $0x70] sm:$0xff]
    %v334 = vld [vmem:[#allocation2 + $0x78] sm:$0xff]
    %v335 = vld [vmem:[%s2] sm:$0x1]
    %v337 = vlaneseq
    %v338 = vshrl.u32 %v337, 7
    %v339 = vsub.s32 0, %v338
    %v340 = vrot.slane %v335, %v339
    %v342 = vadd.f32 %v319, %v340
    %v343 = vadd.f32 %v320, %v340
    %v344 = vadd.f32 %v321, %v340
    %v345 = vadd.f32 %v322, %v340
    %v346 = vadd.f32 %v323, %v340
    %v347 = vadd.f32 %v324, %v340
    %v348 = vadd.f32 %v325, %v340
    %v349 = vadd.f32 %v326, %v340
    %v350 = vadd.f32 %v327, %v340
    %v351 = vadd.f32 %v328, %v340
    %v352 = vadd.f32 %v329, %v340
    %v353 = vadd.f32 %v330, %v340
    %v354 = vadd.f32 %v331, %v340
    %v355 = vadd.f32 %v332, %v340
    %v356 = vadd.f32 %v333, %v340
    %v357 = vadd.f32 %v334, %v340
    %v358 = vpack.c.bf16 %v343, %v342
    %v359 = vpack.c.bf16 %v345, %v344
    %v360 = vpack.c.bf16 %v347, %v346
    %v361 = vpack.c.bf16 %v349, %v348
    %v362 = vpack.c.bf16 %v351, %v350
    %v363 = vpack.c.bf16 %v353, %v352
    %v364 = vpack.c.bf16 %v355, %v354
    %v365 = vpack.c.bf16 %v357, %v356
    %v366 = vld [vmem:[%s3] sm:$0xf]
    %v367 = vld [vmem:[%s3 + $0x4] sm:$0xf]
    %v368 = vld [vmem:[%s3 + $0x8] sm:$0xf]
    %v369 = vld [vmem:[%s3 + $0xc] sm:$0xf]
    %v370 = vld [vmem:[%s3 + $0x10] sm:$0xf]
    %v371 = vld [vmem:[%s3 + $0x14] sm:$0xf]
    %v372 = vld [vmem:[%s3 + $0x18] sm:$0xf]
    %v373 = vld [vmem:[%s3 + $0x1c] sm:$0xf]
    %v374 = vld [vmem:[%s3 + $0x20] sm:$0xf]
    %v375 = vld [vmem:[%s3 + $0x24] sm:$0xf]
    %v376 = vld [vmem:[%s3 + $0x28] sm:$0xf]
    %v377 = vld [vmem:[%s3 + $0x2c] sm:$0xf]
    %v378 = vld [vmem:[%s3 + $0x30] sm:$0xf]
    %v379 = vld [vmem:[%s3 + $0x34] sm:$0xf]
    %v380 = vld [vmem:[%s3 + $0x38] sm:$0xf]
    %v381 = vld [vmem:[%s3 + $0x3c] sm:$0xf]
    %v398 = vunpack.c.l.b16 %v366
    %v399 = vunpack.c.l.b16 %v367
    %v400 = vunpack.c.l.b16 %v368
    %v401 = vunpack.c.l.b16 %v369
    %v402 = vunpack.c.l.b16 %v370
    %v403 = vunpack.c.l.b16 %v371
    %v404 = vunpack.c.l.b16 %v372
    %v405 = vunpack.c.l.b16 %v373
    %v406 = vunpack.c.l.b16 %v374
    %v407 = vunpack.c.l.b16 %v375
    %v408 = vunpack.c.l.b16 %v376
    %v409 = vunpack.c.l.b16 %v377
    %v410 = vunpack.c.l.b16 %v378
    %v411 = vunpack.c.l.b16 %v379
    %v412 = vunpack.c.l.b16 %v380
    %v413 = vunpack.c.l.b16 %v381
    %v414 = vpack.c.b16 %v399, %v398
    %v415 = vpack.c.b16 %v401, %v400
    %v416 = vpack.c.b16 %v403, %v402
    %v417 = vpack.c.b16 %v405, %v404
    %v418 = vpack.c.b16 %v407, %v406
    %v419 = vpack.c.b16 %v409, %v408
    %v420 = vpack.c.b16 %v411, %v410
    %v421 = vpack.c.b16 %v413, %v412
    %430 = vmatprep.subr.bf16.mxu0 0
    %431 = vmatpush1.bf16.msra.mxu0 %v414
    %432 = vmatprep.subr.bf16.mxu0 0
    %433 = vmatpush1.bf16.msra.mxu0 %v415
    %434 = vmatprep.subr.bf16.mxu0 0
    %435 = vmatpush1.bf16.msra.mxu0 %v416
    %436 = vmatprep.subr.bf16.mxu0 0
    %437 = vmatpush1.bf16.msra.mxu0 %v417
    %438 = vmatprep.subr.bf16.mxu0 0
    %439 = vmatpush1.bf16.msra.mxu0 %v418
    %440 = vmatprep.subr.bf16.mxu0 0
    %441 = vmatpush1.bf16.msra.mxu0 %v419
    %442 = vmatprep.subr.bf16.mxu0 0
    %443 = vmatpush1.bf16.msra.mxu0 %v420
    %444 = vmatprep.subr.bf16.mxu0 0
    %445 = vmatpush1.bf16.msra.mxu0 %v421
    %446 = vmatprep.subr.bf16.mxu0 0
    %447 = vmatpush1.bf16.msra.mxu0 0
    %448 = vmatprep.subr.bf16.mxu0 0
    %449 = vmatpush1.bf16.msra.mxu0 0
    %450 = vmatprep.subr.bf16.mxu0 0
    %451 = vmatpush1.bf16.msra.mxu0 0
    %452 = vmatprep.subr.bf16.mxu0 0
    %453 = vmatpush1.bf16.msra.mxu0 0
    %454 = vmatprep.subr.bf16.mxu0 0
    %455 = vmatpush1.bf16.msra.mxu0 0
    %456 = vmatprep.subr.bf16.mxu0 0
    %457 = vmatpush1.bf16.msra.mxu0 0
    %458 = vmatprep.subr.bf16.mxu0 0
    %459 = vmatpush1.bf16.msra.mxu0 0
    %460 = vmatprep.subr.bf16.mxu0 0
    %461 = vmatpush1.bf16.msra.mxu0 0
    %462 = vmatprep.mubr.bf16.mxu0 0
    %463 = vmatmul.mubr.bf16.gmra.mrb[0].mxu0 %v358
    %v464 = vpop.f32.mrb[0].mxu0
    %v465 = vadd.f32 0.0, %v464
    %v466 = vpop.f32.mrb[0].mxu0
    %v467 = vpop.f32.mrb[0].mxu0
    %v468 = vadd.f32 0.0, %v467
    %v469 = vpop.f32.mrb[0].mxu0
    %470 = vmatprep.mubr.bf16.mxu0 0
    %471 = vmatmul.mubr.bf16.gmra.mrb[0].mxu0 %v359
    %v472 = vpop.f32.mrb[0].mxu0
    %v473 = vadd.f32 0.0, %v472
    %v474 = vpop.f32.mrb[0].mxu0
    %v475 = vpop.f32.mrb[0].mxu0
    %v476 = vadd.f32 0.0, %v475
    %v477 = vpop.f32.mrb[0].mxu0
    %478 = vmatprep.mubr.bf16.mxu0 0
    %479 = vmatmul.mubr.bf16.gmra.mrb[0].mxu0 %v360
    %v480 = vpop.f32.mrb[0].mxu0
    %v481 = vadd.f32 0.0, %v480
    %v482 = vpop.f32.mrb[0].mxu0
    %v483 = vpop.f32.mrb[0].mxu0
    %v484 = vadd.f32 0.0, %v483
    %v485 = vpop.f32.mrb[0].mxu0
    %486 = vmatprep.mubr.bf16.mxu0 0
    %487 = vmatmul.mubr.bf16.gmra.mrb[0].mxu0 %v361
    %v488 = vpop.f32.mrb[0].mxu0
    %v489 = vadd.f32 0.0, %v488
    %v490 = vpop.f32.mrb[0].mxu0
    %v491 = vpop.f32.mrb[0].mxu0
    %v492 = vadd.f32 0.0, %v491
    %v493 = vpop.f32.mrb[0].mxu0
    %494 = vmatprep.mubr.bf16.mxu0 0
    %495 = vmatmul.mubr.bf16.gmra.mrb[0].mxu0 %v362
    %v496 = vpop.f32.mrb[0].mxu0
    %v497 = vadd.f32 0.0, %v496
    %v498 = vpop.f32.mrb[0].mxu0
    %v499 = vpop.f32.mrb[0].mxu0
    %v500 = vadd.f32 0.0, %v499
    %v501 = vpop.f32.mrb[0].mxu0
    %502 = vmatprep.mubr.bf16.mxu0 0
    %503 = vmatmul.mubr.bf16.gmra.mrb[0].mxu0 %v363
    %v504 = vpop.f32.mrb[0].mxu0
    %v505 = vadd.f32 0.0, %v504
    %v506 = vpop.f32.mrb[0].mxu0
    %v507 = vpop.f32.mrb[0].mxu0
    %v508 = vadd.f32 0.0, %v507
    %v509 = vpop.f32.mrb[0].mxu0
    %510 = vmatprep.mubr.bf16.mxu0 0
    %511 = vmatmul.mubr.bf16.gmra.mrb[0].mxu0 %v364
    %v512 = vpop.f32.mrb[0].mxu0
    %v513 = vadd.f32 0.0, %v512
    %v514 = vpop.f32.mrb[0].mxu0
    %v515 = vpop.f32.mrb[0].mxu0
    %v516 = vadd.f32 0.0, %v515
    %v517 = vpop.f32.mrb[0].mxu0
    %518 = vmatprep.mubr.bf16.mxu0 0
    %519 = vmatmul.mubr.bf16.gmra.mrb[0].mxu0 %v365
    %v520 = vpop.f32.mrb[0].mxu0
    %v521 = vadd.f32 0.0, %v520
    %v522 = vpop.f32.mrb[0].mxu0
    %v523 = vpop.f32.mrb[0].mxu0
    %v524 = vadd.f32 0.0, %v523
    %v525 = vpop.f32.mrb[0].mxu0
    %526 = vdwg.mxu0
    %v527 = vpack.c.bf16 %v468, %v465
    %v528 = vpack.c.bf16 %v476, %v473
    %v529 = vpack.c.bf16 %v484, %v481
    %v530 = vpack.c.bf16 %v492, %v489
    %v531 = vpack.c.bf16 %v500, %v497
    %v532 = vpack.c.bf16 %v508, %v505
    %v533 = vpack.c.bf16 %v516, %v513
    %v534 = vpack.c.bf16 %v524, %v521
    %v543 = vunpack.c.l.b16 %v527
    %v544 = vunpack.c.h.b16 %v527
    %v545 = vunpack.c.l.b16 %v528
    %v546 = vunpack.c.h.b16 %v528
    %v547 = vunpack.c.l.b16 %v529
    %v548 = vunpack.c.h.b16 %v529
    %v549 = vunpack.c.l.b16 %v530
    %v550 = vunpack.c.h.b16 %v530
    %v551 = vunpack.c.l.b16 %v531
    %v552 = vunpack.c.h.b16 %v531
    %v553 = vunpack.c.l.b16 %v532
    %v554 = vunpack.c.h.b16 %v532
    %v555 = vunpack.c.l.b16 %v533
    %v556 = vunpack.c.h.b16 %v533
    %v557 = vunpack.c.l.b16 %v534
    %v558 = vunpack.c.h.b16 %v534
    %v559 = vpack.c.b16 %v543, %v543
    %v560 = vpack.c.b16 %v544, %v544
    %v561 = vpack.c.b16 %v545, %v545
    %v562 = vpack.c.b16 %v546, %v546
    %v563 = vpack.c.b16 %v547, %v547
    %v564 = vpack.c.b16 %v548, %v548
    %v565 = vpack.c.b16 %v549, %v549
    %v566 = vpack.c.b16 %v550, %v550
    %v567 = vpack.c.b16 %v551, %v551
    %v568 = vpack.c.b16 %v552, %v552
    %v569 = vpack.c.b16 %v553, %v553
    %v570 = vpack.c.b16 %v554, %v554
    %v571 = vpack.c.b16 %v555, %v555
    %v572 = vpack.c.b16 %v556, %v556
    %v573 = vpack.c.b16 %v557, %v557
    %v574 = vpack.c.b16 %v558, %v558
    %591 = vst [vmem:[%s4] sm:$0xf] %v559
    %592 = vst [vmem:[%s4 + $0x4] sm:$0xf] %v560
    %593 = vst [vmem:[%s4 + $0x8] sm:$0xf] %v561
    %594 = vst [vmem:[%s4 + $0xc] sm:$0xf] %v562
    %595 = vst [vmem:[%s4 + $0x10] sm:$0xf] %v563
    %596 = vst [vmem:[%s4 + $0x14] sm:$0xf] %v564
    %597 = vst [vmem:[%s4 + $0x18] sm:$0xf] %v565
    %598 = vst [vmem:[%s4 + $0x1c] sm:$0xf] %v566
    %599 = vst [vmem:[%s4 + $0x20] sm:$0xf] %v567
    %600 = vst [vmem:[%s4 + $0x24] sm:$0xf] %v568
    %601 = vst [vmem:[%s4 + $0x28] sm:$0xf] %v569
    %602 = vst [vmem:[%s4 + $0x2c] sm:$0xf] %v570
    %603 = vst [vmem:[%s4 + $0x30] sm:$0xf] %v571
    %604 = vst [vmem:[%s4 + $0x34] sm:$0xf] %v572
    %605 = vst [vmem:[%s4 + $0x38] sm:$0xf] %v573
    %606 = vst [vmem:[%s4 + $0x3c] sm:$0xf] %v574
  $region25: #{gcn_linear_forward.2} parent=0 // pred_fallthru
    _
  // Predicated region
  $region26: #{gcn_linear_forward.2} parent=0 // pred_check
    _
  $region27: #{gcn_linear_forward.2} parent=0 // pred_check_branch
    %608 = sbr.rel (0) target = $region29
  $region28: #{gcn_linear_forward.2} parent=0 // pred_region
    _
  $region29: #{gcn_linear_forward.2} parent=0 // pred_fallthru
    _
  // Predicated region
  $region30: #{gcn_linear_forward.2} parent=0 // pred_check
    _
  $region31: #{gcn_linear_forward.2} parent=0 // pred_check_branch
    %610 = sbr.rel (0) target = $region33
  $region32: #{gcn_linear_forward.2} parent=0 // pred_region
    _
  $region33: #{gcn_linear_forward.2} parent=0 // pred_fallthru
    _

</llo_original>
